<compile_context>
chip_gen: v7x
topology: tpu7x:2x2x1
jax: 0.10.0
libtpu: 0.0.40
codegen_flags: <defaults>
</compile_context>

<pallas_src>
import jax
import jax.numpy as jnp
from jax.experimental import pallas as pl
from jax.experimental.pallas import tpu as pltpu


def cbow_out_kernel(h_ref, w2t_ref, o_ref):
    """One vocab tile: logits[:, tile] = h @ W_out.T[:, tile] (f32 accumulate)."""
    o_ref[...] = jnp.dot(
        h_ref[...], w2t_ref[...], preferred_element_type=jnp.float32
    ).astype(o_ref.dtype)


def _round_down(x, m):
    return (x // m) * m


def _choose_tile_v(V, dim_ff, B, tile_v_request, *, vmem_budget_bytes, align=256):
    """Pick the vocab tile width: big (amortize grid-step overhead), but
    (a) leaves >= 2 tiles so both v7x TensorCores get work, and
    (b) fits the double-buffered VMEM budget."""
    V_align = pl.cdiv(V, align) * align
    tile_v = min(int(tile_v_request), int(V_align))
    # Keep at least 2 vocab tiles when the vocab allows it (v7x megacore).
    if V_align >= 2 * align:
        tile_v = min(tile_v, max(align, _round_down(V_align // 2, align)))
    # VMEM: 2 x (dim_ff, tile_v) bf16 W_out buffers + 2 x (B, tile_v) f32 out
    # buffers + resident (B, dim_ff) bf16 h must fit the budget.
    per_lane_bytes = 2 * dim_ff * 2 + 2 * B * 4
    avail = vmem_budget_bytes - B * dim_ff * 2
    tile_v = min(tile_v, max(align, _round_down(avail // per_lane_bytes, align)))
    return int(tile_v)


def cbow_forward(x_ids, emb_table, w_proj, w_out, *,
                 tile_v=4096, weight_dtype=jnp.bfloat16):
    """x_ids: (B, context) int32; emb_table: (V, E);
    w_proj: (dim_ff, context*E) f32; w_out: (V, dim_ff) f32.
    Returns f32 (B, V) logits."""
    B, C = x_ids.shape
    V, E = emb_table.shape
    dim_ff = w_proj.shape[0]

    # Glue (stays in JAX): embedding gather + flatten + the small first Linear.
    # The first matmul is kept in f32 to preserve nn.Linear fidelity; only the
    # large W_out stream (the bandwidth bottleneck) is stored in bf16.
    # TODO(synk): fuse the embedding gather into the kernel via scalar-prefetched
    # token ids once B is large enough for the extra HBM round-trip to matter.
    x_flat = jnp.take(emb_table, x_ids, axis=0).reshape(B, C * E)       # (B, C*E) f32
    h = jnp.dot(x_flat, w_proj.T, preferred_element_type=jnp.float32)   # (B, dim_ff) f32
    h_lo = h.astype(weight_dtype)                                       # kernel input

    w2t = w_out.T.astype(weight_dtype)                                  # (dim_ff, V) bf16

    # Tile the vocab axis (the streamed / parallel axis).
    vmem_budget = 24 * 1024 * 1024          # tile-selection budget (fits all gens)
    tile_v = _choose_tile_v(V, dim_ff, B, tile_v,
                            vmem_budget_bytes=vmem_budget)
    n_tiles = pl.cdiv(V, tile_v)
    V_pad = n_tiles * tile_v
    if V_pad != V:
        w2t = jnp.pad(w2t, ((0, 0), (0, V_pad - V)))

    logits_pad = pl.pallas_call(
        cbow_out_kernel,
        out_shape=jax.ShapeDtypeStruct((B, V_pad), jnp.float32),
        grid_spec=pltpu.PrefetchScalarGridSpec(
            num_scalar_prefetch=0,
            grid=(n_tiles,),
            in_specs=[
                # h: tiny, resident across all vocab tiles.
                pl.BlockSpec((B, dim_ff), lambda j: (0, 0)),
                # W_out.T vocab tile: the dominant HBM stream, double-buffered.
                pl.BlockSpec((dim_ff, tile_v), lambda j: (0, j)),
            ],
            out_specs=pl.BlockSpec((B, tile_v), lambda j: (0, j)),
        ),
        compiler_params=pltpu.CompilerParams(
            # No cross-step state -> vocab axis is embarrassingly parallel
            # (sharded across v7x's 2 TensorCores; no-op on v5e/v6e).
            dimension_semantics=("parallel",),
            # Raise v5e's 16 MiB default scoped VMEM; within v7x's 64 MiB physical.
            vmem_limit_bytes=32 * 1024 * 1024,
        ),
    )(h_lo, w2t)

    return logits_pad[:, :V]


def cbow_reference(x_ids, emb_table, w_proj, w_out, weight_dtype=jnp.bfloat16):
    """Pure-JAX reference mirroring the same numerics (f32 first matmul,
    bf16 W_out storage, f32 accumulation)."""
    B = x_ids.shape[0]
    x_flat = jnp.take(emb_table, x_ids, axis=0).reshape(B, -1)
    h = jnp.dot(x_flat, w_proj.T, preferred_element_type=jnp.float32)
    return jnp.dot(h.astype(weight_dtype), w_out.T.astype(weight_dtype),
                   preferred_element_type=jnp.float32)


if __name__ == "__main__":
    # Small shapes consistent with the module (scaled down from the defaults),
    # but large enough to exercise multi-tile vocab streaming.
    vocab_size = 2048
    embedding_dim = 64
    context_size = 4
    dim_ff = 128
    batch = 8

    key = jax.random.PRNGKey(0)
    k_emb, k_proj, k_out, k_x = jax.random.split(key, 4)

    emb_table = jax.random.normal(k_emb, (vocab_size, embedding_dim), jnp.float32) * 0.02
    w_proj = jax.random.normal(
        k_proj, (dim_ff, context_size * embedding_dim), jnp.float32) * 0.02
    w_out = jax.random.normal(k_out, (vocab_size, dim_ff), jnp.float32) * 0.02
    x_ids = jax.random.randint(k_x, (batch, context_size), 0, vocab_size, jnp.int32)

    logits = cbow_forward(x_ids, emb_table, w_proj, w_out)
    logits = jax.block_until_ready(logits)

    ref = cbow_reference(x_ids, emb_table, w_proj, w_out)
    assert logits.shape == (batch, vocab_size)
    assert jnp.allclose(logits, ref, atol=1e-4, rtol=1e-3), "mismatch vs reference"

    print("KERNEL_OK")
</pallas_src>

<mosaic_0001>
module attributes {stable_mosaic.version = 11 : i64} {
  func.func @cbow_out_kernel(%arg0: i32, %arg1: memref<8x128xbf16, #tpu.memory_space<vmem>>, %arg2: memref<128x1024xbf16, #tpu.memory_space<vmem>>, %arg3: memref<8x1024xf32, #tpu.memory_space<vmem>>) attributes {dimension_semantics = [#tpu.dimension_semantics<parallel>], iteration_bounds = array<i64: 2>, scalar_prefetch = 0 : i64, scratch_operands = 0 : i64, tpu.core_type = #tpu.core_type<tc>, window_params = [{pipeline_mode = #tpu.pipeline_mode<synchronous>, transform_indices = @transform_0, window_bounds = array<i64: 8, 128>}, {transform_indices = @transform_1, window_bounds = array<i64: 128, 1024>}, {transform_indices = @transform_2, window_bounds = array<i64: 8, 1024>}]} {
    %c0 = arith.constant 0 : index
    %c0_0 = arith.constant 0 : index
    %0 = vector.load %arg1[%c0, %c0_0] : memref<8x128xbf16, #tpu.memory_space<vmem>>, vector<8x128xbf16>
    %c0_1 = arith.constant 0 : index
    %c0_2 = arith.constant 0 : index
    %1 = vector.load %arg2[%c0_1, %c0_2] : memref<128x1024xbf16, #tpu.memory_space<vmem>>, vector<128x1024xbf16>
    %cst = arith.constant dense<0.000000e+00> : vector<8x1024xf32>
    %2 = tpu.matmul %0, %1, %cst {dimension_numbers = #tpu.dot_dimension_numbers<[1], [0], [0], [1], [0, 0, 1, 1], [], []>} : vector<8x128xbf16>, vector<128x1024xbf16>, vector<8x1024xf32> -> vector<8x1024xf32>
    %c0_3 = arith.constant 0 : index
    %c0_4 = arith.constant 0 : index
    %3 = vector.load %arg3[%c0_3, %c0_4] : memref<8x1024xf32, #tpu.memory_space<vmem>>, vector<8x1024xf32>
    tpu.vector_store %arg3[%c0_3, %c0_4], %2 {strides = array<i32>} : memref<8x1024xf32, #tpu.memory_space<vmem>>, vector<8x1024xf32>,
    return
  }
  func.func @transform_0(%arg0: i32) -> (i32, i32) {
    %c0_i32 = arith.constant 0 : i32
    %c0_i32_0 = arith.constant 0 : i32
    %c0_i32_1 = arith.constant 0 : i32
    return %c0_i32, %c0_i32_0 : i32, i32
  }
  func.func @transform_1(%arg0: i32) -> (i32, i32) {
    %c0_i32 = arith.constant 0 : i32
    %c0_i32_0 = arith.constant 0 : i32
    return %c0_i32, %arg0 : i32, i32
  }
  func.func @transform_2(%arg0: i32) -> (i32, i32) {
    %c0_i32 = arith.constant 0 : i32
    %c0_i32_0 = arith.constant 0 : i32
    return %c0_i32, %arg0 : i32, i32
  }
}

</mosaic_0001>

<llo_original>
// kernel: tpu_custom_call.1
$region0: #{tpu_custom_call.1}
  #allocation0 [shape = 'u32[]', space=smem, size = 0x4, offset = 0x4, fixed_abs, tag = 'smem constant byte address 0x4 - core index']
  #allocation1 [shape = 'u32[144,128]{1,0:T(1,128)}', space=vmem, size = 0x12000, scoped, tag = 'internal scratch']
  %s0 = inlined_call_operand.hbm [shape: bf16[8,128], index: 0, kind: input, shape index: {}]
  %s1 = inlined_call_operand.hbm [shape: bf16[128,2048], index: 1, kind: input, shape index: {}]
  %s2 = inlined_call_operand.hbm [shape: f32[8,2048], index: 2, kind: output, shape index: {}]
  %s3 = sld [smem:[#allocation0]]
  $region49: #{tpu_custom_call.1} parent=0
    _
  %s5 = ssub.s32 1, %s3
  %s6 = scalar_select 0, %s5, %s3
  $region1: #{tpu_custom_call.1} parent=0
    #allocation2 [shape = 'u8[2048]{0}', space=vmem, size = 0x800, scoped, tag = 'input window, operand 0, single buffered']
    #allocation3 [shape = 's32[2]{0}', space=sflag, size = 0x8, scoped, tag = 'scoped memory for tpu_custom_call.1']
    #allocation4 [shape = 's32[2]{0}', space=sflag, size = 0x8, scoped, tag = 'scoped memory for tpu_custom_call.1']
    #allocation5 [shape = 'u8[524288]{0}', space=vmem, size = 0x80000, scoped, tag = 'input window, operand 1']
    #allocation6 [shape = 's32[2]{0}', space=sflag, size = 0x8, scoped, tag = 'scoped memory for tpu_custom_call.1']
    #allocation7 [shape = 'u8[65536]{0}', space=vmem, size = 0x10000, scoped, tag = 'output window, operand 0']
    %7 = vsyncpa [#allocation3], 0
    %8 = vsyncpa [#allocation6], 0
    %s9 = scalar_lea.sflag [#allocation6], 1
    %10 = vsyncpa %s9, 0
    %11 = vsyncpa [#allocation4], 0
    %s12 = scalar_lea.sflag [#allocation4], 1
    %13 = vsyncpa %s12, 0
    loop: start=0, step=1, limit=4
    $region2: #{tpu_custom_call.1} parent=1 // loop_pre_header
      _
    $region3: #{tpu_custom_call.1} parent=1 // loop_header
      %s15 = sphi 0, %s19
      %p16 = scmp.ge.s32.totalorder %s15, 4
      %s23 = sphi 0, %s23
      %s25 = sphi 0, %s23
      %s26 = sphi 0, %s25
      %s40 = sphi 0, %s26
      %s46 = sphi 0, %s48
      %s49 = sphi 0, %s46
      %s50 = sphi 0, %s49
      %s66 = sphi 0, %s50
      %s72 = sphi 0, %s74
      %s75 = sphi 0, %s72
      %s76 = sphi 0, %s75
      %s92 = sphi 0, %s76
    $region4: #{tpu_custom_call.1} parent=1 // loop_header_branch
      %18 = sbr.rel (%p16) target = $region8
    $region5: #{tpu_custom_call.1} parent=1 // loop_body
      %s20 = ssub.s32 %s15, 1
      %s21 = ssub.s32 %s15, 2
      %s22 = sadd.s32 %s15, 1
      %s24 = sadd.s32 %s23, 1
      %p27 = scmp.eq.s32.totalorder %s15, 1
      %p28 = scmp.ne.s32.totalorder %s23, %s25
      %p29 = scmp.eq.s32.totalorder %s15, 0
      %p30 = por %p28, %p29
      %p31 = scmp.ne.s32.totalorder %s23, %s25
      %p32 = scmp.eq.s32.totalorder %s20, 1
      %p33 = por %p31, %p32
      %p34 = scmp.ne.s32.totalorder %s25, %s26
      %p35 = scmp.eq.s32.totalorder %s20, 0
      %p36 = por %p34, %p35
      %p37 = scmp.ne.s32.totalorder %s25, %s26
      %p38 = scmp.eq.s32.totalorder %s21, 1
      %p39 = por %p37, %p38
      %p41 = scmp.ne.s32.totalorder %s26, %s40
      %p42 = scmp.eq.s32.totalorder %s21, 0
      %p43 = por %p41, %p42
      %s44 = ssub.s32 %s15, %s22
      %p45 = scmp.eq.s32.totalorder %s44, 0
      %s47 = sadd.s32 %s46, 1
      %s48 = scalar_select %p45, %s46, %s47
      %p51 = pneg %p45
      %p52 = scmp.eq.s32.totalorder %s15, 1
      %p53 = por %p51, %p52
      %p54 = scmp.ne.s32.totalorder %s46, %s49
      %p55 = scmp.eq.s32.totalorder %s15, 0
      %p56 = por %p54, %p55
      %p57 = scmp.ne.s32.totalorder %s46, %s49
      %p58 = scmp.eq.s32.totalorder %s20, 1
      %p59 = por %p57, %p58
      %p60 = scmp.ne.s32.totalorder %s49, %s50
      %p61 = scmp.eq.s32.totalorder %s20, 0
      %p62 = por %p60, %p61
      %p63 = scmp.ne.s32.totalorder %s49, %s50
      %p64 = scmp.eq.s32.totalorder %s21, 1
      %p65 = por %p63, %p64
      %p67 = scmp.ne.s32.totalorder %s50, %s66
      %p68 = scmp.eq.s32.totalorder %s21, 0
      %p69 = por %p67, %p68
      %s70 = ssub.s32 %s15, %s22
      %p71 = scmp.eq.s32.totalorder %s70, 0
      %s73 = sadd.s32 %s72, 1
      %s74 = scalar_select %p71, %s72, %s73
      %p77 = pneg %p71
      %p78 = scmp.eq.s32.totalorder %s15, 1
      %p79 = por %p77, %p78
      %p80 = scmp.ne.s32.totalorder %s72, %s75
      %p81 = scmp.eq.s32.totalorder %s15, 0
      %p82 = por %p80, %p81
      %p83 = scmp.ne.s32.totalorder %s72, %s75
      %p84 = scmp.eq.s32.totalorder %s20, 1
      %p85 = por %p83, %p84
      %p86 = scmp.ne.s32.totalorder %s75, %s76
      %p87 = scmp.eq.s32.totalorder %s20, 0
      %p88 = por %p86, %p87
      %p89 = scmp.ne.s32.totalorder %s75, %s76
      %p90 = scmp.eq.s32.totalorder %s21, 1
      %p91 = por %p89, %p90
      %p93 = scmp.ne.s32.totalorder %s76, %s92
      %p94 = scmp.eq.s32.totalorder %s21, 0
      %p95 = por %p93, %p94
      %p96 = scmp.le.s32.totalorder 1, %s15
      %p97 = scmp.lt.s32.totalorder %s15, 3
      %p98 = pnand %p96, %p97
      %p99 = pneg %p98
      // Predicated region
      $region9: #{tpu_custom_call.1} parent=5 // pred_check
        _
      $region10: #{tpu_custom_call.1} parent=5 // pred_check_branch
        %101 = sbr.rel (%p98) target = $region12
      $region11: #{tpu_custom_call.1} parent=5 // pred_region
        %s102 = ssub.s32 %s15, 1
        // Predicated region
        $region13: #{tpu_custom_call.1} parent=11 // pred_check
          %p103 = pneg %p36
        $region14: #{tpu_custom_call.1} parent=11 // pred_check_branch
          %105 = sbr.rel (%p103) target = $region16
        $region15: #{tpu_custom_call.1} parent=11 // pred_region
          %s107 = ssub.s32 64, 64
          %108 = vsyncadd [#allocation3], %s107
          %s110 = sshll.u32 [#allocation2], 4
          %s111 = int_to_ptr.vmem [resolvable:$true] %s110
          %113 = dma.hbm_to_vmem [thread:$0]  %s0, 64, %s111, [#allocation3]
        $region16: #{tpu_custom_call.1} parent=11 // pred_fallthru
          _
      $region12: #{tpu_custom_call.1} parent=5 // pred_fallthru
        _
      %p114 = scmp.lt.s32.totalorder %s15, 2
      // Predicated region
      $region17: #{tpu_custom_call.1} parent=5 // pred_check
        %p115 = pneg %p114
      $region18: #{tpu_custom_call.1} parent=5 // pred_check_branch
        %117 = sbr.rel (%p115) target = $region20
      $region19: #{tpu_custom_call.1} parent=5 // pred_region
        // Predicated region
        $region21: #{tpu_custom_call.1} parent=19 // pred_check
          %p118 = pneg %p56
        $region22: #{tpu_custom_call.1} parent=19 // pred_check_branch
          %120 = sbr.rel (%p118) target = $region24
        $region23: #{tpu_custom_call.1} parent=19 // pred_region
          %s121 = sand.u32 %s46, 1
          %s122 = scalar_lea.sflag [#allocation6], %s121
          %s123 = sand.u32 %s46, 1
          %s124 = smul.addr %s123, 512
          %s125 = scalar_lea.vmem [#allocation5], %s124
          %s126 = smul.u32 8, %s15
          %s128 = ssub.s32 8192, 8192
          %129 = vsyncadd %s122, %s128
          %s130 = smul.addr %s126, 64
          %s131 = scalar_lea.hbm %s1, %s130
          %s132 = sshll.u32 %s125, 4
          %s133 = int_to_ptr.vmem [resolvable:$true] %s132
          %138 = dma.hbm_to_vmem [thread:$0]  %s131, 8192, %s133, %s122, 1024, 512, 32
        $region24: #{tpu_custom_call.1} parent=19 // pred_fallthru
          _
      $region20: #{tpu_custom_call.1} parent=5 // pred_fallthru
        _
      %p139 = scmp.le.s32.totalorder 1, %s15
      %p140 = scmp.lt.s32.totalorder %s15, 3
      %p141 = pnand %p139, %p140
      %p142 = pneg %p141
      // Predicated region
      $region25: #{tpu_custom_call.1} parent=5 // pred_check
        _
      $region26: #{tpu_custom_call.1} parent=5 // pred_check_branch
        %144 = sbr.rel (%p141) target = $region28
      $region27: #{tpu_custom_call.1} parent=5 // pred_region
        %s145 = ssub.s32 %s15, 1
        // Predicated region
        $region29: #{tpu_custom_call.1} parent=27 // pred_check
          %p146 = pneg %p36
        $region30: #{tpu_custom_call.1} parent=27 // pred_check_branch
          %148 = sbr.rel (%p146) target = $region32
        $region31: #{tpu_custom_call.1} parent=27 // pred_region
          %149 = dma.done [#allocation3], 64
        $region32: #{tpu_custom_call.1} parent=27 // pred_fallthru
          _
        %s150 = sand.u32 %s49, 1
        %s151 = scalar_lea.sflag [#allocation6], %s150
        %s152 = sand.u32 %s49, 1
        %s153 = smul.addr %s152, 512
        %s154 = scalar_lea.vmem [#allocation5], %s153
        // Predicated region
        $region33: #{tpu_custom_call.1} parent=27 // pred_check
          %p155 = pneg %p62
        $region34: #{tpu_custom_call.1} parent=27 // pred_check_branch
          %157 = sbr.rel (%p155) target = $region36
        $region35: #{tpu_custom_call.1} parent=27 // pred_region
          %158 = dma.done %s151, 8192
        $region36: #{tpu_custom_call.1} parent=27 // pred_fallthru
          _
        %p159 = pneg %p36
        %p160 = pneg %p33
        %s161 = sand.u32 %s49, 1
        %s162 = scalar_lea.sflag [#allocation6], %s161
        %s163 = sand.u32 %s49, 1
        %s164 = smul.addr %s163, 512
        %s165 = scalar_lea.vmem [#allocation5], %s164
        %p166 = pneg %p62
        %p167 = pneg %p59
        %p168 = pneg %p88
        %p169 = pneg %p85
        %s170 = sand.u32 %s75, 1
        %s171 = scalar_lea.sflag [#allocation4], %s170
        %s172 = sand.u32 %s75, 1
        %s173 = smul.addr %s172, 64
        %s174 = scalar_lea.vmem [#allocation7], %s173
        %s175 = smul.u32 8, %s20
        %s176 = smul.u32 8, %s20
        %v178 = vld [vmem:[#allocation2] sm:$0xf]
        %v179 = vld [vmem:[%s154] sm:$0xff]
        %v180 = vld [vmem:[%s154 + $0x8] sm:$0xff]
        %v181 = vld [vmem:[%s154 + $0x10] sm:$0xff]
        %v182 = vld [vmem:[%s154 + $0x18] sm:$0xff]
        %v183 = vld [vmem:[%s154 + $0x20] sm:$0xff]
        %v184 = vld [vmem:[%s154 + $0x28] sm:$0xff]
        %v185 = vld [vmem:[%s154 + $0x30] sm:$0xff]
        %v186 = vld [vmem:[%s154 + $0x38] sm:$0xff]
        %v187 = vld [vmem:[%s154 + $0x40] sm:$0xff]
        %v188 = vld [vmem:[%s154 + $0x48] sm:$0xff]
        %v189 = vld [vmem:[%s154 + $0x50] sm:$0xff]
        %v190 = vld [vmem:[%s154 + $0x58] sm:$0xff]
        %v191 = vld [vmem:[%s154 + $0x60] sm:$0xff]
        %v192 = vld [vmem:[%s154 + $0x68] sm:$0xff]
        %v193 = vld [vmem:[%s154 + $0x70] sm:$0xff]
        %v194 = vld [vmem:[%s154 + $0x78] sm:$0xff]
        %v195 = vld [vmem:[%s154 + $0x80] sm:$0xff]
        %v196 = vld [vmem:[%s154 + $0x88] sm:$0xff]
        %v197 = vld [vmem:[%s154 + $0x90] sm:$0xff]
        %v198 = vld [vmem:[%s154 + $0x98] sm:$0xff]
        %v199 = vld [vmem:[%s154 + $0xa0] sm:$0xff]
        %v200 = vld [vmem:[%s154 + $0xa8] sm:$0xff]
        %v201 = vld [vmem:[%s154 + $0xb0] sm:$0xff]
        %v202 = vld [vmem:[%s154 + $0xb8] sm:$0xff]
        %v203 = vld [vmem:[%s154 + $0xc0] sm:$0xff]
        %v204 = vld [vmem:[%s154 + $0xc8] sm:$0xff]
        %v205 = vld [vmem:[%s154 + $0xd0] sm:$0xff]
        %v206 = vld [vmem:[%s154 + $0xd8] sm:$0xff]
        %v207 = vld [vmem:[%s154 + $0xe0] sm:$0xff]
        %v208 = vld [vmem:[%s154 + $0xe8] sm:$0xff]
        %v209 = vld [vmem:[%s154 + $0xf0] sm:$0xff]
        %v210 = vld [vmem:[%s154 + $0xf8] sm:$0xff]
        %v211 = vld [vmem:[%s154 + $0x100] sm:$0xff]
        %v212 = vld [vmem:[%s154 + $0x108] sm:$0xff]
        %v213 = vld [vmem:[%s154 + $0x110] sm:$0xff]
        %v214 = vld [vmem:[%s154 + $0x118] sm:$0xff]
        %v215 = vld [vmem:[%s154 + $0x120] sm:$0xff]
        %v216 = vld [vmem:[%s154 + $0x128] sm:$0xff]
        %v217 = vld [vmem:[%s154 + $0x130] sm:$0xff]
        %v218 = vld [vmem:[%s154 + $0x138] sm:$0xff]
        %v219 = vld [vmem:[%s154 + $0x140] sm:$0xff]
        %v220 = vld [vmem:[%s154 + $0x148] sm:$0xff]
        %v221 = vld [vmem:[%s154 + $0x150] sm:$0xff]
        %v222 = vld [vmem:[%s154 + $0x158] sm:$0xff]
        %v223 = vld [vmem:[%s154 + $0x160] sm:$0xff]
        %v224 = vld [vmem:[%s154 + $0x168] sm:$0xff]
        %v225 = vld [vmem:[%s154 + $0x170] sm:$0xff]
        %v226 = vld [vmem:[%s154 + $0x178] sm:$0xff]
        %v227 = vld [vmem:[%s154 + $0x180] sm:$0xff]
        %v228 = vld [vmem:[%s154 + $0x188] sm:$0xff]
        %v229 = vld [vmem:[%s154 + $0x190] sm:$0xff]
        %v230 = vld [vmem:[%s154 + $0x198] sm:$0xff]
        %v231 = vld [vmem:[%s154 + $0x1a0] sm:$0xff]
        %v232 = vld [vmem:[%s154 + $0x1a8] sm:$0xff]
        %v233 = vld [vmem:[%s154 + $0x1b0] sm:$0xff]
        %v234 = vld [vmem:[%s154 + $0x1b8] sm:$0xff]
        %v235 = vld [vmem:[%s154 + $0x1c0] sm:$0xff]
        %v236 = vld [vmem:[%s154 + $0x1c8] sm:$0xff]
        %v237 = vld [vmem:[%s154 + $0x1d0] sm:$0xff]
        %v238 = vld [vmem:[%s154 + $0x1d8] sm:$0xff]
        %v239 = vld [vmem:[%s154 + $0x1e0] sm:$0xff]
        %v240 = vld [vmem:[%s154 + $0x1e8] sm:$0xff]
        %v241 = vld [vmem:[%s154 + $0x1f0] sm:$0xff]
        %v242 = vld [vmem:[%s154 + $0x1f8] sm:$0xff]
        %v307 = vunpack.c.l.b16 %v179
        %v308 = vunpack.c.h.b16 %v179
        %v309 = vunpack.c.l.b16 %v180
        %v310 = vunpack.c.h.b16 %v180
        %v311 = vunpack.c.l.b16 %v181
        %v312 = vunpack.c.h.b16 %v181
        %v313 = vunpack.c.l.b16 %v182
        %v314 = vunpack.c.h.b16 %v182
        %v315 = vunpack.c.l.b16 %v183
        %v316 = vunpack.c.h.b16 %v183
        %v317 = vunpack.c.l.b16 %v184
        %v318 = vunpack.c.h.b16 %v184
        %v319 = vunpack.c.l.b16 %v185
        %v320 = vunpack.c.h.b16 %v185
        %v321 = vunpack.c.l.b16 %v186
        %v322 = vunpack.c.h.b16 %v186
        %v323 = vunpack.c.l.b16 %v187
        %v324 = vunpack.c.h.b16 %v187
        %v325 = vunpack.c.l.b16 %v188
        %v326 = vunpack.c.h.b16 %v188
        %v327 = vunpack.c.l.b16 %v189
        %v328 = vunpack.c.h.b16 %v189
        %v329 = vunpack.c.l.b16 %v190
        %v330 = vunpack.c.h.b16 %v190
        %v331 = vunpack.c.l.b16 %v191
        %v332 = vunpack.c.h.b16 %v191
        %v333 = vunpack.c.l.b16 %v192
        %v334 = vunpack.c.h.b16 %v192
        %v335 = vunpack.c.l.b16 %v193
        %v336 = vunpack.c.h.b16 %v193
        %v337 = vunpack.c.l.b16 %v194
        %v338 = vunpack.c.h.b16 %v194
        %v339 = vunpack.c.l.b16 %v195
        %v340 = vunpack.c.h.b16 %v195
        %v341 = vunpack.c.l.b16 %v196
        %v342 = vunpack.c.h.b16 %v196
        %v343 = vunpack.c.l.b16 %v197
        %v344 = vunpack.c.h.b16 %v197
        %v345 = vunpack.c.l.b16 %v198
        %v346 = vunpack.c.h.b16 %v198
        %v347 = vunpack.c.l.b16 %v199
        %v348 = vunpack.c.h.b16 %v199
        %v349 = vunpack.c.l.b16 %v200
        %v350 = vunpack.c.h.b16 %v200
        %v351 = vunpack.c.l.b16 %v201
        %v352 = vunpack.c.h.b16 %v201
        %v353 = vunpack.c.l.b16 %v202
        %v354 = vunpack.c.h.b16 %v202
        %v355 = vunpack.c.l.b16 %v203
        %v356 = vunpack.c.h.b16 %v203
        %v357 = vunpack.c.l.b16 %v204
        %v358 = vunpack.c.h.b16 %v204
        %v359 = vunpack.c.l.b16 %v205
        %v360 = vunpack.c.h.b16 %v205
        %v361 = vunpack.c.l.b16 %v206
        %v362 = vunpack.c.h.b16 %v206
        %v363 = vunpack.c.l.b16 %v207
        %v364 = vunpack.c.h.b16 %v207
        %v365 = vunpack.c.l.b16 %v208
        %v366 = vunpack.c.h.b16 %v208
        %v367 = vunpack.c.l.b16 %v209
        %v368 = vunpack.c.h.b16 %v209
        %v369 = vunpack.c.l.b16 %v210
        %v370 = vunpack.c.h.b16 %v210
        %v371 = vunpack.c.l.b16 %v211
        %v372 = vunpack.c.h.b16 %v211
        %v373 = vunpack.c.l.b16 %v212
        %v374 = vunpack.c.h.b16 %v212
        %v375 = vunpack.c.l.b16 %v213
        %v376 = vunpack.c.h.b16 %v213
        %v377 = vunpack.c.l.b16 %v214
        %v378 = vunpack.c.h.b16 %v214
        %v379 = vunpack.c.l.b16 %v215
        %v380 = vunpack.c.h.b16 %v215
        %v381 = vunpack.c.l.b16 %v216
        %v382 = vunpack.c.h.b16 %v216
        %v383 = vunpack.c.l.b16 %v217
        %v384 = vunpack.c.h.b16 %v217
        %v385 = vunpack.c.l.b16 %v218
        %v386 = vunpack.c.h.b16 %v218
        %v387 = vunpack.c.l.b16 %v219
        %v388 = vunpack.c.h.b16 %v219
        %v389 = vunpack.c.l.b16 %v220
        %v390 = vunpack.c.h.b16 %v220
        %v391 = vunpack.c.l.b16 %v221
        %v392 = vunpack.c.h.b16 %v221
        %v393 = vunpack.c.l.b16 %v222
        %v394 = vunpack.c.h.b16 %v222
        %v395 = vunpack.c.l.b16 %v223
        %v396 = vunpack.c.h.b16 %v223
        %v397 = vunpack.c.l.b16 %v224
        %v398 = vunpack.c.h.b16 %v224
        %v399 = vunpack.c.l.b16 %v225
        %v400 = vunpack.c.h.b16 %v225
        %v401 = vunpack.c.l.b16 %v226
        %v402 = vunpack.c.h.b16 %v226
        %v403 = vunpack.c.l.b16 %v227
        %v404 = vunpack.c.h.b16 %v227
        %v405 = vunpack.c.l.b16 %v228
        %v406 = vunpack.c.h.b16 %v228
        %v407 = vunpack.c.l.b16 %v229
        %v408 = vunpack.c.h.b16 %v229
        %v409 = vunpack.c.l.b16 %v230
        %v410 = vunpack.c.h.b16 %v230
        %v411 = vunpack.c.l.b16 %v231
        %v412 = vunpack.c.h.b16 %v231
        %v413 = vunpack.c.l.b16 %v232
        %v414 = vunpack.c.h.b16 %v232
        %v415 = vunpack.c.l.b16 %v233
        %v416 = vunpack.c.h.b16 %v233
        %v417 = vunpack.c.l.b16 %v234
        %v418 = vunpack.c.h.b16 %v234
        %v419 = vunpack.c.l.b16 %v235
        %v420 = vunpack.c.h.b16 %v235
        %v421 = vunpack.c.l.b16 %v236
        %v422 = vunpack.c.h.b16 %v236
        %v423 = vunpack.c.l.b16 %v237
        %v424 = vunpack.c.h.b16 %v237
        %v425 = vunpack.c.l.b16 %v238
        %v426 = vunpack.c.h.b16 %v238
        %v427 = vunpack.c.l.b16 %v239
        %v428 = vunpack.c.h.b16 %v239
        %v429 = vunpack.c.l.b16 %v240
        %v430 = vunpack.c.h.b16 %v240
        %v431 = vunpack.c.l.b16 %v241
        %v432 = vunpack.c.h.b16 %v241
        %v433 = vunpack.c.l.b16 %v242
        %v434 = vunpack.c.h.b16 %v242
        %v435 = vpack.c.b16 %v315, %v307
        %v436 = vpack.c.b16 %v316, %v308
        %v437 = vpack.c.b16 %v317, %v309
        %v438 = vpack.c.b16 %v318, %v310
        %v439 = vpack.c.b16 %v319, %v311
        %v440 = vpack.c.b16 %v320, %v312
        %v441 = vpack.c.b16 %v321, %v313
        %v442 = vpack.c.b16 %v322, %v314
        %v443 = vpack.c.b16 %v331, %v323
        %v444 = vpack.c.b16 %v332, %v324
        %v445 = vpack.c.b16 %v333, %v325
        %v446 = vpack.c.b16 %v334, %v326
        %v447 = vpack.c.b16 %v335, %v327
        %v448 = vpack.c.b16 %v336, %v328
        %v449 = vpack.c.b16 %v337, %v329
        %v450 = vpack.c.b16 %v338, %v330
        %v451 = vpack.c.b16 %v347, %v339
        %v452 = vpack.c.b16 %v348, %v340
        %v453 = vpack.c.b16 %v349, %v341
        %v454 = vpack.c.b16 %v350, %v342
        %v455 = vpack.c.b16 %v351, %v343
        %v456 = vpack.c.b16 %v352, %v344
        %v457 = vpack.c.b16 %v353, %v345
        %v458 = vpack.c.b16 %v354, %v346
        %v459 = vpack.c.b16 %v363, %v355
        %v460 = vpack.c.b16 %v364, %v356
        %v461 = vpack.c.b16 %v365, %v357
        %v462 = vpack.c.b16 %v366, %v358
        %v463 = vpack.c.b16 %v367, %v359
        %v464 = vpack.c.b16 %v368, %v360
        %v465 = vpack.c.b16 %v369, %v361
        %v466 = vpack.c.b16 %v370, %v362
        %v467 = vpack.c.b16 %v379, %v371
        %v468 = vpack.c.b16 %v380, %v372
        %v469 = vpack.c.b16 %v381, %v373
        %v470 = vpack.c.b16 %v382, %v374
        %v471 = vpack.c.b16 %v383, %v375
        %v472 = vpack.c.b16 %v384, %v376
        %v473 = vpack.c.b16 %v385, %v377
        %v474 = vpack.c.b16 %v386, %v378
        %v475 = vpack.c.b16 %v395, %v387
        %v476 = vpack.c.b16 %v396, %v388
        %v477 = vpack.c.b16 %v397, %v389
        %v478 = vpack.c.b16 %v398, %v390
        %v479 = vpack.c.b16 %v399, %v391
        %v480 = vpack.c.b16 %v400, %v392
        %v481 = vpack.c.b16 %v401, %v393
        %v482 = vpack.c.b16 %v402, %v394
        %v483 = vpack.c.b16 %v411, %v403
        %v484 = vpack.c.b16 %v412, %v404
        %v485 = vpack.c.b16 %v413, %v405
        %v486 = vpack.c.b16 %v414, %v406
        %v487 = vpack.c.b16 %v415, %v407
        %v488 = vpack.c.b16 %v416, %v408
        %v489 = vpack.c.b16 %v417, %v409
        %v490 = vpack.c.b16 %v418, %v410
        %v491 = vpack.c.b16 %v427, %v419
        %v492 = vpack.c.b16 %v428, %v420
        %v493 = vpack.c.b16 %v429, %v421
        %v494 = vpack.c.b16 %v430, %v422
        %v495 = vpack.c.b16 %v431, %v423
        %v496 = vpack.c.b16 %v432, %v424
        %v497 = vpack.c.b16 %v433, %v425
        %v498 = vpack.c.b16 %v434, %v426
        %563 = vmatprep.subr.bf16.mxu0 %v436
        %564 = vmatpush1.bf16.msra.mxu0 %v435
        %565 = vmatprep.subr.bf16.mxu0 %v444
        %566 = vmatpush1.bf16.msra.mxu0 %v443
        %567 = vmatprep.subr.bf16.mxu0 %v452
        %568 = vmatpush1.bf16.msra.mxu0 %v451
        %569 = vmatprep.subr.bf16.mxu0 %v460
        %570 = vmatpush1.bf16.msra.mxu0 %v459
        %571 = vmatprep.subr.bf16.mxu0 %v468
        %572 = vmatpush1.bf16.msra.mxu0 %v467
        %573 = vmatprep.subr.bf16.mxu0 %v476
        %574 = vmatpush1.bf16.msra.mxu0 %v475
        %575 = vmatprep.subr.bf16.mxu0 %v484
        %576 = vmatpush1.bf16.msra.mxu0 %v483
        %577 = vmatprep.subr.bf16.mxu0 %v492
        %578 = vmatpush1.bf16.msra.mxu0 %v491
        %579 = vmatprep.subr.bf16.mxu0 0
        %580 = vmatpush1.bf16.msra.mxu0 0
        %581 = vmatprep.subr.bf16.mxu0 0
        %582 = vmatpush1.bf16.msra.mxu0 0
        %583 = vmatprep.subr.bf16.mxu0 0
        %584 = vmatpush1.bf16.msra.mxu0 0
        %585 = vmatprep.subr.bf16.mxu0 0
        %586 = vmatpush1.bf16.msra.mxu0 0
        %587 = vmatprep.subr.bf16.mxu0 0
        %588 = vmatpush1.bf16.msra.mxu0 0
        %589 = vmatprep.subr.bf16.mxu0 0
        %590 = vmatpush1.bf16.msra.mxu0 0
        %591 = vmatprep.subr.bf16.mxu0 0
        %592 = vmatpush1.bf16.msra.mxu0 0
        %593 = vmatprep.subr.bf16.mxu0 0
        %594 = vmatpush1.bf16.msra.mxu0 0
        %595 = vmatprep.mubr.bf16.mxu0 0
        %596 = vmatmul.mubr.bf16.gmra.mrb[0].mxu0 %v178
        %v597 = vpop.f32.mrb[0].mxu0
        %v598 = vadd.f32 0.0, %v597
        %v599 = vpop.f32.mrb[0].mxu0
        %v600 = vadd.f32 0.0, %v599
        %v601 = vpop.f32.mrb[0].mxu0
        %v602 = vpop.f32.mrb[0].mxu0
        %603 = vdwg.mxu0
        %604 = vmatprep.subr.bf16.mxu0 %v438
        %605 = vmatpush1.bf16.msra.mxu0 %v437
        %606 = vmatprep.subr.bf16.mxu0 %v446
        %607 = vmatpush1.bf16.msra.mxu0 %v445
        %608 = vmatprep.subr.bf16.mxu0 %v454
        %609 = vmatpush1.bf16.msra.mxu0 %v453
        %610 = vmatprep.subr.bf16.mxu0 %v462
        %611 = vmatpush1.bf16.msra.mxu0 %v461
        %612 = vmatprep.subr.bf16.mxu0 %v470
        %613 = vmatpush1.bf16.msra.mxu0 %v469
        %614 = vmatprep.subr.bf16.mxu0 %v478
        %615 = vmatpush1.bf16.msra.mxu0 %v477
        %616 = vmatprep.subr.bf16.mxu0 %v486
        %617 = vmatpush1.bf16.msra.mxu0 %v485
        %618 = vmatprep.subr.bf16.mxu0 %v494
        %619 = vmatpush1.bf16.msra.mxu0 %v493
        %620 = vmatprep.subr.bf16.mxu0 0
        %621 = vmatpush1.bf16.msra.mxu0 0
        %622 = vmatprep.subr.bf16.mxu0 0
        %623 = vmatpush1.bf16.msra.mxu0 0
        %624 = vmatprep.subr.bf16.mxu0 0
        %625 = vmatpush1.bf16.msra.mxu0 0
        %626 = vmatprep.subr.bf16.mxu0 0
        %627 = vmatpush1.bf16.msra.mxu0 0
        %628 = vmatprep.subr.bf16.mxu0 0
        %629 = vmatpush1.bf16.msra.mxu0 0
        %630 = vmatprep.subr.bf16.mxu0 0
        %631 = vmatpush1.bf16.msra.mxu0 0
        %632 = vmatprep.subr.bf16.mxu0 0
        %633 = vmatpush1.bf16.msra.mxu0 0
        %634 = vmatprep.subr.bf16.mxu0 0
        %635 = vmatpush1.bf16.msra.mxu0 0
        %636 = vmatprep.mubr.bf16.mxu0 0
        %637 = vmatmul.mubr.bf16.gmra.mrb[0].mxu0 %v178
        %v638 = vpop.f32.mrb[0].mxu0
        %v639 = vadd.f32 0.0, %v638
        %v640 = vpop.f32.mrb[0].mxu0
        %v641 = vadd.f32 0.0, %v640
        %v642 = vpop.f32.mrb[0].mxu0
        %v643 = vpop.f32.mrb[0].mxu0
        %644 = vdwg.mxu0
        %645 = vmatprep.subr.bf16.mxu0 %v440
        %646 = vmatpush1.bf16.msra.mxu0 %v439
        %647 = vmatprep.subr.bf16.mxu0 %v448
        %648 = vmatpush1.bf16.msra.mxu0 %v447
        %649 = vmatprep.subr.bf16.mxu0 %v456
        %650 = vmatpush1.bf16.msra.mxu0 %v455
        %651 = vmatprep.subr.bf16.mxu0 %v464
        %652 = vmatpush1.bf16.msra.mxu0 %v463
        %653 = vmatprep.subr.bf16.mxu0 %v472
        %654 = vmatpush1.bf16.msra.mxu0 %v471
        %655 = vmatprep.subr.bf16.mxu0 %v480
        %656 = vmatpush1.bf16.msra.mxu0 %v479
        %657 = vmatprep.subr.bf16.mxu0 %v488
        %658 = vmatpush1.bf16.msra.mxu0 %v487
        %659 = vmatprep.subr.bf16.mxu0 %v496
        %660 = vmatpush1.bf16.msra.mxu0 %v495
        %661 = vmatprep.subr.bf16.mxu0 0
        %662 = vmatpush1.bf16.msra.mxu0 0
        %663 = vmatprep.subr.bf16.mxu0 0
        %664 = vmatpush1.bf16.msra.mxu0 0
        %665 = vmatprep.subr.bf16.mxu0 0
        %666 = vmatpush1.bf16.msra.mxu0 0
        %667 = vmatprep.subr.bf16.mxu0 0
        %668 = vmatpush1.bf16.msra.mxu0 0
        %669 = vmatprep.subr.bf16.mxu0 0
        %670 = vmatpush1.bf16.msra.mxu0 0
        %671 = vmatprep.subr.bf16.mxu0 0
        %672 = vmatpush1.bf16.msra.mxu0 0
        %673 = vmatprep.subr.bf16.mxu0 0
        %674 = vmatpush1.bf16.msra.mxu0 0
        %675 = vmatprep.subr.bf16.mxu0 0
        %676 = vmatpush1.bf16.msra.mxu0 0
        %677 = vmatprep.mubr.bf16.mxu0 0
        %678 = vmatmul.mubr.bf16.gmra.mrb[0].mxu0 %v178
        %v679 = vpop.f32.mrb[0].mxu0
        %v680 = vadd.f32 0.0, %v679
        %v681 = vpop.f32.mrb[0].mxu0
        %v682 = vadd.f32 0.0, %v681
        %v683 = vpop.f32.mrb[0].mxu0
        %v684 = vpop.f32.mrb[0].mxu0
        %685 = vdwg.mxu0
        %686 = vmatprep.subr.bf16.mxu0 %v442
        %687 = vmatpush1.bf16.msra.mxu0 %v441
        %688 = vmatprep.subr.bf16.mxu0 %v450
        %689 = vmatpush1.bf16.msra.mxu0 %v449
        %690 = vmatprep.subr.bf16.mxu0 %v458
        %691 = vmatpush1.bf16.msra.mxu0 %v457
        %692 = vmatprep.subr.bf16.mxu0 %v466
        %693 = vmatpush1.bf16.msra.mxu0 %v465
        %694 = vmatprep.subr.bf16.mxu0 %v474
        %695 = vmatpush1.bf16.msra.mxu0 %v473
        %696 = vmatprep.subr.bf16.mxu0 %v482
        %697 = vmatpush1.bf16.msra.mxu0 %v481
        %698 = vmatprep.subr.bf16.mxu0 %v490
        %699 = vmatpush1.bf16.msra.mxu0 %v489
        %700 = vmatprep.subr.bf16.mxu0 %v498
        %701 = vmatpush1.bf16.msra.mxu0 %v497
        %702 = vmatprep.subr.bf16.mxu0 0
        %703 = vmatpush1.bf16.msra.mxu0 0
        %704 = vmatprep.subr.bf16.mxu0 0
        %705 = vmatpush1.bf16.msra.mxu0 0
        %706 = vmatprep.subr.bf16.mxu0 0
        %707 = vmatpush1.bf16.msra.mxu0 0
        %708 = vmatprep.subr.bf16.mxu0 0
        %709 = vmatpush1.bf16.msra.mxu0 0
        %710 = vmatprep.subr.bf16.mxu0 0
        %711 = vmatpush1.bf16.msra.mxu0 0
        %712 = vmatprep.subr.bf16.mxu0 0
        %713 = vmatpush1.bf16.msra.mxu0 0
        %714 = vmatprep.subr.bf16.mxu0 0
        %715 = vmatpush1.bf16.msra.mxu0 0
        %716 = vmatprep.subr.bf16.mxu0 0
        %717 = vmatpush1.bf16.msra.mxu0 0
        %718 = vmatprep.mubr.bf16.mxu0 0
        %719 = vmatmul.mubr.bf16.gmra.mrb[0].mxu0 %v178
        %v720 = vpop.f32.mrb[0].mxu0
        %v721 = vadd.f32 0.0, %v720
        %v722 = vpop.f32.mrb[0].mxu0
        %v723 = vadd.f32 0.0, %v722
        %v724 = vpop.f32.mrb[0].mxu0
        %v725 = vpop.f32.mrb[0].mxu0
        %726 = vdwg.mxu0
        %727 = vst [vmem:[%s174] sm:$0xff] %v598
        %728 = vst [vmem:[%s174 + $0x8] sm:$0xff] %v600
        %729 = vst [vmem:[%s174 + $0x10] sm:$0xff] %v639
        %730 = vst [vmem:[%s174 + $0x18] sm:$0xff] %v641
        %731 = vst [vmem:[%s174 + $0x20] sm:$0xff] %v680
        %732 = vst [vmem:[%s174 + $0x28] sm:$0xff] %v682
        %733 = vst [vmem:[%s174 + $0x30] sm:$0xff] %v721
        %734 = vst [vmem:[%s174 + $0x38] sm:$0xff] %v723
        %s735 = sand.u32 %s75, 1
        %s736 = scalar_lea.sflag [#allocation4], %s735
        %s737 = sand.u32 %s75, 1
        %s738 = smul.addr %s737, 64
        %s739 = scalar_lea.vmem [#allocation7], %s738
        // Predicated region
        $region37: #{tpu_custom_call.1} parent=27 // pred_check
          %p740 = pneg %p85
        $region38: #{tpu_custom_call.1} parent=27 // pred_check_branch
          %742 = sbr.rel (%p740) target = $region40
        $region39: #{tpu_custom_call.1} parent=27 // pred_region
          %s743 = smul.u32 8, %s20
          %s745 = ssub.s32 1024, 1024
          %746 = vsyncadd %s736, %s745
          %s747 = smul.addr %s743, 128
          %s748 = scalar_lea.hbm %s2, %s747
          %s750 = sshll.u32 %s739, 4
          %s751 = int_to_ptr.vmem [resolvable:$true] %s750
          %753 = dma.vmem_to_hbm [thread:$0]  %s751, 1024, %s748, %s736
        $region40: #{tpu_custom_call.1} parent=27 // pred_fallthru
          _
      $region28: #{tpu_custom_call.1} parent=5 // pred_fallthru
        _
      %p754 = scmp.le.s32.totalorder 2, %s15
      // Predicated region
      $region41: #{tpu_custom_call.1} parent=5 // pred_check
        %p755 = pneg %p754
      $region42: #{tpu_custom_call.1} parent=5 // pred_check_branch
        %757 = sbr.rel (%p755) target = $region44
      $region43: #{tpu_custom_call.1} parent=5 // pred_region
        %s758 = ssub.s32 %s15, 2
        // Predicated region
        $region45: #{tpu_custom_call.1} parent=43 // pred_check
          %p759 = pneg %p91
        $region46: #{tpu_custom_call.1} parent=43 // pred_check_branch
          %761 = sbr.rel (%p759) target = $region48
        $region47: #{tpu_custom_call.1} parent=43 // pred_region
          %s762 = sand.u32 %s76, 1
          %s763 = scalar_lea.sflag [#allocation4], %s762
          %s764 = sand.u32 %s76, 1
          %s765 = smul.addr %s764, 64
          %s766 = scalar_lea.vmem [#allocation7], %s765
          %767 = dma.done %s763, 1024
        $region48: #{tpu_custom_call.1} parent=43 // pred_fallthru
          _
      $region44: #{tpu_custom_call.1} parent=5 // pred_fallthru
        _
    $region6: #{tpu_custom_call.1} parent=1 // loop_footer
      %s19 = sadd.s32 1, %s15
    $region7: #{tpu_custom_call.1} parent=1 // loop_footer_branch
      %14 = sbr.rel target = $region3
    $region8: #{tpu_custom_call.1} parent=1 // loop_exit
      _
    %768 = vsyncpa [#allocation3], 1
    %s769 = scalar_lea.sflag [#allocation3], 1
    %770 = vsyncpa %s769, 1
    %771 = vsyncpa [#allocation6], 1
    %s772 = scalar_lea.sflag [#allocation6], 1
    %773 = vsyncpa %s772, 1
    %774 = vsyncpa [#allocation4], 1
    %s775 = scalar_lea.sflag [#allocation4], 1
    %776 = vsyncpa %s775, 1

</llo_original>
